<compile_context>
chip_gen: v7x
topology: tpu7x:2x2x1
jax: 0.10.0
libtpu: 0.0.40
codegen_flags: <defaults>
</compile_context>

<pallas_src>
import math

import jax
import jax.numpy as jnp
from jax.experimental import pallas as pl
from jax.experimental.pallas import tpu as pltpu


D_MODEL = 64
IN_CHANNELS = (16, 32, 32, 64)   # x_conv1..x_conv4 feature widths
LEVEL_NAMES = ("x_conv1", "x_conv2", "x_conv3", "x_conv4")

# Rows of the packed view per grid step.  Worst-case block bytes per packed
# row (p=4, C_in=32): 512 B in + 1024 B out; double-buffered at 4096 rows
# this is ~12.5 MiB, under the 16 MiB v5e scoped-VMEM default.
MAX_ROW_TILE = 4096


# --------------------------------------------------------------------------
# Pallas kernel: one row-tile of   out = x @ W + b
# --------------------------------------------------------------------------
def _linear_kernel(x_ref, w_ref, b_ref, o_ref):
    # x_ref: (tile, K)  w_ref: (K, C_out)  b_ref: (1, C_out)  o_ref: (tile, C_out)
    #
    # NOTE(correctness): the ragged last tile relies on Pallas block clipping:
    # out-of-range rows of x_ref hold undefined data that flows through the
    # MXU but is never written back.  This is only safe because every output
    # row depends solely on its own input row — do NOT add any cross-row
    # reduction / max / softmax here without masking the tail.
    acc = jnp.dot(x_ref[...], w_ref[...], preferred_element_type=jnp.float32)
    o_ref[...] = (acc + b_ref[...]).astype(o_ref.dtype)


def _pick_row_tile(rows):
    """Largest tile that fits VMEM; no forced minimum step count (v5e/v6e are
    single-TC so extra steps are pure ~0.35us overhead).  When multiple steps
    are unavoidable, use an EVEN step count so v7x's two TensorCores split the
    'parallel' row axis evenly."""
    if rows <= MAX_ROW_TILE:
        return rows                                   # single full-extent block
    steps = pl.cdiv(rows, MAX_ROW_TILE)
    if steps % 2:
        steps += 1                                    # balanced 2-TC split on v7x
    tile = -(-rows // steps)                          # ceil
    tile = -(-tile // 8) * 8                          # multiple of 8 sublanes
    return tile


def _tiled_matmul_bias(x, w, b2d):
    """y[rows, c_out] = x[rows, c_in] @ w[c_in, c_out] + b2d[1, c_out].

    Row-tiled; the ragged last tile is handled by Pallas block clipping
    (padded reads / clipped writes) — no host-side pad or slice.
    """
    rows, c_in = x.shape
    c_out = w.shape[1]
    tile = _pick_row_tile(rows)
    grid = (pl.cdiv(rows, tile),)
    return pl.pallas_call(
        _linear_kernel,
        out_shape=jax.ShapeDtypeStruct((rows, c_out), x.dtype),
        grid=grid,
        in_specs=[
            pl.BlockSpec((tile, c_in), lambda i: (i, 0)),
            pl.BlockSpec((c_in, c_out), lambda i: (0, 0)),   # weights: resident
            pl.BlockSpec((1, c_out), lambda i: (0, 0)),      # bias: resident
        ],
        out_specs=pl.BlockSpec((tile, c_out), lambda i: (i, 0)),
        compiler_params=pltpu.CompilerParams(
            dimension_semantics=("parallel",)),
    )(x, w, b2d)


def pallas_linear(x, level_params):
    """y = x @ w + b for one level, lane-dense kernel path.

    Rows are processed in groups of p = min(128 // C_in, 4) against a
    precomputed block-diagonal [[W,0..],[0,W..],...] weight so the kernel's
    output blocks are 128-256 lanes wide (dense vst) and input blocks are
    64-128 lanes wide.  The packing / unpacking reshapes are contiguous and
    free.  The <p leftover rows are computed with plain JAX (tiny) so the
    kernel never falls back to masked partial stores.
    """
    w, b = level_params["w"], level_params["b"]
    w_p, b_p, p = level_params["w_packed"], level_params["b_packed"], level_params["p"]
    n, c_in = x.shape
    c_out = w.shape[1]
    if n == 0:
        return jnp.zeros((0, c_out), dtype=x.dtype)

    n_main = (n // p) * p
    parts = []
    if n_main > 0:
        x_main = x[:n_main].reshape(n_main // p, p * c_in)    # contiguous, free
        out_p = _tiled_matmul_bias(x_main, w_p, b_p)          # (n_main//p, p*c_out)
        parts.append(out_p.reshape(n_main, c_out))            # contiguous, free
    if n_main < n:
        # <p leftover rows: plain JAX, stitched onto the kernel output.
        parts.append(x[n_main:] @ w + b)
    return parts[0] if len(parts) == 1 else jnp.concatenate(parts, axis=0)


# --------------------------------------------------------------------------
# Parameter init (deterministic, mimics torch.nn.Linear default init)
# --------------------------------------------------------------------------
def _packing_factor(c_in):
    # p*c_out output lanes (>=128 -> dense stores).  Capped at 4 so the
    # block-diagonal zero-FLOPs stay irrelevant on v5e's weak f32 MXU path.
    return max(1, min(128 // c_in, 4))


def _pack_block_diag(w, b, p):
    """[[W,0,..],[0,W,..],...] and tiled bias — computed ONCE at init."""
    c_in, c_out = w.shape
    w_p = jnp.zeros((p * c_in, p * c_out), dtype=w.dtype)
    for k in range(p):
        w_p = w_p.at[k * c_in:(k + 1) * c_in, k * c_out:(k + 1) * c_out].set(w)
    b_p = jnp.tile(b, (p,)).reshape(1, p * c_out)
    return w_p, b_p


def init_linear_params(key, c_in, c_out):
    k_w, k_b = jax.random.split(key)
    bound = 1.0 / math.sqrt(c_in)
    # PyTorch stores weight as [out, in]; keep kernel-friendly [in, out].
    w = jax.random.uniform(k_w, (c_in, c_out), jnp.float32, -bound, bound)
    b = jax.random.uniform(k_b, (c_out,), jnp.float32, -bound, bound)
    p = _packing_factor(c_in)
    w_p, b_p = _pack_block_diag(w, b, p)
    return {"w": w, "b": b, "p": p, "w_packed": w_p, "b_packed": b_p}


def init_cross_scale_trans_params(key):
    keys = jax.random.split(key, len(IN_CHANNELS))
    return [init_linear_params(k, c, D_MODEL) for k, c in zip(keys, IN_CHANNELS)]


# --------------------------------------------------------------------------
# Forward pass (semantics of cross_scale_trans.forward)
# --------------------------------------------------------------------------
def cross_scale_trans_forward(params, batch_dict):
    """Mirrors cross_scale_trans.forward: the four per-level query projections
    are computed from multi_scale_3d_features; the module's trailing nested
    loop over level pairs is a no-op and batch_dict is returned unchanged."""
    ms_features = batch_dict["multi_scale_3d_features"]
    ms_query = []
    for level_params, name in zip(params, LEVEL_NAMES):
        feats = ms_features[name]["features"]
        ms_query.append(pallas_linear(feats, level_params))
    # TODO(synk): the four per-level launches could be fused into 1-2
    # pallas_calls via a scalar-prefetched row-offset table (levels differ in
    # C_in / row counts); kept separate here for clarity and low risk.
    # TODO(synk): get_reference_points is a staticmethod never invoked in
    # forward; it is intentionally not ported.
    # TODO(synk): bf16 inputs would ~halve HBM traffic (kernel is bandwidth
    # bound) but would need a looser correctness tolerance; kept f32.
    return batch_dict, ms_query


# --------------------------------------------------------------------------
if __name__ == "__main__":
    key = jax.random.PRNGKey(0)
    k_params, k_data, k_big = jax.random.split(key, 3)

    params = init_cross_scale_trans_params(k_params)

    # Small synthetic sparse-voxel counts per scale (exercises full-packed,
    # leftover-row, and tiny-level paths).
    n_voxels = (96, 70, 41, 24)
    data_keys = jax.random.split(k_data, len(n_voxels))
    batch_dict = {
        "multi_scale_3d_features": {
            name: {"features": jax.random.normal(dk, (n, c), dtype=jnp.float32)}
            for name, dk, n, c in zip(LEVEL_NAMES, data_keys, n_voxels, IN_CHANNELS)
        }
    }

    out_batch_dict, ms_query = cross_scale_trans_forward(params, batch_dict)
    ms_query = jax.block_until_ready(ms_query)

    # Correctness check against plain-JAX reference.
    for level_params, name, q in zip(params, LEVEL_NAMES, ms_query):
        x = batch_dict["multi_scale_3d_features"][name]["features"]
        ref = x @ level_params["w"] + level_params["b"]
        assert q.shape == (x.shape[0], D_MODEL), (q.shape, x.shape)
        assert jnp.allclose(q, ref, atol=1e-5, rtol=1e-5), name

    # Larger case: exercises the multi-step (even-step) grid and the clipped
    # ragged last tile of the packed path.
    x_big = jax.random.normal(k_big, (20000, IN_CHANNELS[0]), dtype=jnp.float32)
    q_big = jax.block_until_ready(pallas_linear(x_big, params[0]))
    ref_big = x_big @ params[0]["w"] + params[0]["b"]
    assert jnp.allclose(q_big, ref_big, atol=1e-5, rtol=1e-5)

    # Zero-voxel edge case (guarded early return, no pallas_call with grid 0).
    q_empty = pallas_linear(jnp.zeros((0, IN_CHANNELS[0]), jnp.float32), params[0])
    assert q_empty.shape == (0, D_MODEL)

    print("KERNEL_OK")
</pallas_src>

<mosaic_0001>
module attributes {stable_mosaic.version = 11 : i64} {
  func.func @_linear_kernel(%arg0: i32, %arg1: memref<24x64xf32, #tpu.memory_space<vmem>>, %arg2: memref<64x256xf32, #tpu.memory_space<vmem>>, %arg3: memref<1x256xf32, #tpu.memory_space<vmem>>, %arg4: memref<24x256xf32, #tpu.memory_space<vmem>>) attributes {dimension_semantics = [#tpu.dimension_semantics<parallel>], iteration_bounds = array<i64: 1>, scalar_prefetch = 0 : i64, scratch_operands = 0 : i64, tpu.core_type = #tpu.core_type<tc>, window_params = [{transform_indices = @transform_0, window_bounds = array<i64: 24, 64>}, {pipeline_mode = #tpu.pipeline_mode<synchronous>, transform_indices = @transform_1, window_bounds = array<i64: 64, 256>}, {pipeline_mode = #tpu.pipeline_mode<synchronous>, transform_indices = @transform_2, window_bounds = array<i64: 1, 256>}, {transform_indices = @transform_3, window_bounds = array<i64: 24, 256>}]} {
    %c0 = arith.constant 0 : index
    %c0_0 = arith.constant 0 : index
    %0 = vector.load %arg1[%c0, %c0_0] : memref<24x64xf32, #tpu.memory_space<vmem>>, vector<24x64xf32>
    %c0_1 = arith.constant 0 : index
    %c0_2 = arith.constant 0 : index
    %1 = vector.load %arg2[%c0_1, %c0_2] : memref<64x256xf32, #tpu.memory_space<vmem>>, vector<64x256xf32>
    %cst = arith.constant dense<0.000000e+00> : vector<24x256xf32>
    %2 = tpu.matmul %0, %1, %cst {dimension_numbers = #tpu.dot_dimension_numbers<[1], [0], [0], [1], [0, 0, 1, 1], [], []>} : vector<24x64xf32>, vector<64x256xf32>, vector<24x256xf32> -> vector<24x256xf32>
    %c0_3 = arith.constant 0 : index
    %c0_4 = arith.constant 0 : index
    %3 = vector.load %arg3[%c0_3, %c0_4] : memref<1x256xf32, #tpu.memory_space<vmem>>, vector<1x256xf32>
    %4 = vector.broadcast %3 : vector<1x256xf32> to vector<24x256xf32>
    %5 = arith.addf %2, %4 : vector<24x256xf32>
    %c0_5 = arith.constant 0 : index
    %c0_6 = arith.constant 0 : index
    %6 = vector.load %arg4[%c0_5, %c0_6] : memref<24x256xf32, #tpu.memory_space<vmem>>, vector<24x256xf32>
    tpu.vector_store %arg4[%c0_5, %c0_6], %5 {strides = array<i32>} : memref<24x256xf32, #tpu.memory_space<vmem>>, vector<24x256xf32>,
    return
  }
  func.func @transform_0(%arg0: i32) -> (i32, i32) {
    %c0_i32 = arith.constant 0 : i32
    %c0_i32_0 = arith.constant 0 : i32
    return %arg0, %c0_i32 : i32, i32
  }
  func.func @transform_1(%arg0: i32) -> (i32, i32) {
    %c0_i32 = arith.constant 0 : i32
    %c0_i32_0 = arith.constant 0 : i32
    %c0_i32_1 = arith.constant 0 : i32
    return %c0_i32, %c0_i32_0 : i32, i32
  }
  func.func @transform_2(%arg0: i32) -> (i32, i32) {
    %c0_i32 = arith.constant 0 : i32
    %c0_i32_0 = arith.constant 0 : i32
    %c0_i32_1 = arith.constant 0 : i32
    return %c0_i32, %c0_i32_0 : i32, i32
  }
  func.func @transform_3(%arg0: i32) -> (i32, i32) {
    %c0_i32 = arith.constant 0 : i32
    %c0_i32_0 = arith.constant 0 : i32
    return %arg0, %c0_i32 : i32, i32
  }
}

</mosaic_0001>

<llo_original>
// kernel: tpu_custom_call.1
$region0: #{tpu_custom_call.1}
  #allocation0 [shape = 'u32[]', space=smem, size = 0x4, offset = 0x4, fixed_abs, tag = 'smem constant byte address 0x4 - core index']
  #allocation1 [shape = 'u32[144,128]{1,0:T(1,128)}', space=vmem, size = 0x12000, scoped, tag = 'internal scratch']
  %s0 = inlined_call_operand.hbm [shape: f32[24,64], index: 0, kind: input, shape index: {}]
  %s1 = inlined_call_operand.hbm [shape: f32[64,256], index: 1, kind: input, shape index: {}]
  %s2 = inlined_call_operand.vmem [shape: f32[1,256], index: 2, kind: input, shape index: {}]
  %s3 = inlined_call_operand.hbm [shape: f32[24,256], index: 3, kind: output, shape index: {}]
  %s4 = sld [smem:[#allocation0]]
  $region30: #{tpu_custom_call.1} parent=0
    _
  %s6 = ssub.s32 1, %s4
  %s7 = scalar_select 0, %s6, %s4
  $region1: #{tpu_custom_call.1} parent=0
    #allocation2 [shape = 'u8[12288]{0}', space=vmem, size = 0x3000, scoped, tag = 'input window, operand 0, single buffered']
    #allocation3 [shape = 's32[1]{0}', space=sflag, size = 0x4, scoped, tag = 'scoped memory for tpu_custom_call.1']
    #allocation4 [shape = 's32[1]{0}', space=sflag, size = 0x4, scoped, tag = 'scoped memory for tpu_custom_call.1']
    #allocation5 [shape = 'u8[65536]{0}', space=vmem, size = 0x10000, scoped, tag = 'input window, operand 1, single buffered']
    #allocation6 [shape = 's32[1]{0}', space=sflag, size = 0x4, scoped, tag = 'scoped memory for tpu_custom_call.1']
    #allocation7 [shape = 'u8[24576]{0}', space=vmem, size = 0x6000, scoped, tag = 'output window, operand 0, single buffered']
    %8 = vsyncpa [#allocation3], 0
    %9 = vsyncpa [#allocation6], 0
    %10 = vsyncpa [#allocation4], 0
    // Predicated region
    $region2: #{tpu_custom_call.1} parent=1 // pred_check
      _
    $region3: #{tpu_custom_call.1} parent=1 // pred_check_branch
      %12 = sbr.rel (0) target = $region5
    $region4: #{tpu_custom_call.1} parent=1 // pred_region
      %s14 = ssub.s32 384, 384
      %15 = vsyncadd [#allocation3], %s14
      %s16 = sshll.u32 [#allocation2], 4
      %s17 = int_to_ptr.vmem [resolvable:$true] %s16
      %22 = dma.hbm_to_vmem [thread:$0]  %s0, 384, %s17, [#allocation3], 128, 128, 8
    $region5: #{tpu_custom_call.1} parent=1 // pred_fallthru
      _
    // Predicated region
    $region6: #{tpu_custom_call.1} parent=1 // pred_check
      _
    $region7: #{tpu_custom_call.1} parent=1 // pred_check_branch
      %24 = sbr.rel (0) target = $region9
    $region8: #{tpu_custom_call.1} parent=1 // pred_region
      %s26 = ssub.s32 2048, 2048
      %27 = vsyncadd [#allocation6], %s26
      %s28 = sshll.u32 [#allocation5], 4
      %s29 = int_to_ptr.vmem [resolvable:$true] %s28
      %34 = dma.hbm_to_vmem [thread:$0]  %s1, 2048, %s29, [#allocation6], 256, 256, 16
    $region9: #{tpu_custom_call.1} parent=1 // pred_fallthru
      _
    // Predicated region
    $region10: #{tpu_custom_call.1} parent=1 // pred_check
      _
    $region11: #{tpu_custom_call.1} parent=1 // pred_check_branch
      %36 = sbr.rel (0) target = $region13
    $region12: #{tpu_custom_call.1} parent=1 // pred_region
      _
    $region13: #{tpu_custom_call.1} parent=1 // pred_fallthru
      _
    // Predicated region
    $region14: #{tpu_custom_call.1} parent=1 // pred_check
      _
    $region15: #{tpu_custom_call.1} parent=1 // pred_check_branch
      %38 = sbr.rel (0) target = $region17
    $region16: #{tpu_custom_call.1} parent=1 // pred_region
      %39 = dma.done [#allocation3], 384
    $region17: #{tpu_custom_call.1} parent=1 // pred_fallthru
      _
    // Predicated region
    $region18: #{tpu_custom_call.1} parent=1 // pred_check
      _
    $region19: #{tpu_custom_call.1} parent=1 // pred_check_branch
      %41 = sbr.rel (0) target = $region21
    $region20: #{tpu_custom_call.1} parent=1 // pred_region
      %42 = dma.done [#allocation6], 2048
    $region21: #{tpu_custom_call.1} parent=1 // pred_fallthru
      _
    %v43 = vld [vmem:[#allocation2] sm:$0xff]
    %v44 = vld [vmem:[#allocation2 + $0x8] sm:$0xff]
    %v45 = vld [vmem:[#allocation2 + $0x10] sm:$0xff]
    %v46 = vld [vmem:[#allocation5] sm:$0xff]
    %v47 = vld [vmem:[#allocation5 + $0x8] sm:$0xff]
    %v48 = vld [vmem:[#allocation5 + $0x10] sm:$0xff]
    %v49 = vld [vmem:[#allocation5 + $0x18] sm:$0xff]
    %v50 = vld [vmem:[#allocation5 + $0x20] sm:$0xff]
    %v51 = vld [vmem:[#allocation5 + $0x28] sm:$0xff]
    %v52 = vld [vmem:[#allocation5 + $0x30] sm:$0xff]
    %v53 = vld [vmem:[#allocation5 + $0x38] sm:$0xff]
    %v54 = vld [vmem:[#allocation5 + $0x40] sm:$0xff]
    %v55 = vld [vmem:[#allocation5 + $0x48] sm:$0xff]
    %v56 = vld [vmem:[#allocation5 + $0x50] sm:$0xff]
    %v57 = vld [vmem:[#allocation5 + $0x58] sm:$0xff]
    %v58 = vld [vmem:[#allocation5 + $0x60] sm:$0xff]
    %v59 = vld [vmem:[#allocation5 + $0x68] sm:$0xff]
    %v60 = vld [vmem:[#allocation5 + $0x70] sm:$0xff]
    %v61 = vld [vmem:[#allocation5 + $0x78] sm:$0xff]
    %v62 = vld [vmem:[%s2] sm:$0x3]
    %v64 = vlaneseq
    %v65 = vshrl.u32 %v64, 7
    %v66 = vsub.s32 0, %v65
    %v67 = vrot.slane %v62, %v66
    %v68 = vlaneseq
    %v69 = vshrl.u32 %v68, 7
    %v70 = vsub.s32 1, %v69
    %v71 = vrot.slane %v62, %v70
    %vm74 = vcmask 523264
    %v76 = vsel %vm74, %v43, 0
    %v79 = vsel %vm74, %v44, 0
    %v82 = vsel %vm74, %v45, 0
    %84 = vmatprep.subr.mxu0 %v47
    %85 = vmatpush1.msra.mxu0 %v46
    %86 = vmatprep.subr.mxu0 %v49
    %87 = vmatpush1.msra.mxu0 %v48
    %88 = vmatprep.subr.mxu0 %v51
    %89 = vmatpush1.msra.mxu0 %v50
    %90 = vmatprep.subr.mxu0 %v53
    %91 = vmatpush1.msra.mxu0 %v52
    %92 = vmatprep.subr.mxu0 %v55
    %93 = vmatpush1.msra.mxu0 %v54
    %94 = vmatprep.subr.mxu0 %v57
    %95 = vmatpush1.msra.mxu0 %v56
    %96 = vmatprep.subr.mxu0 %v59
    %97 = vmatpush1.msra.mxu0 %v58
    %98 = vmatprep.subr.mxu0 %v61
    %99 = vmatpush1.msra.mxu0 %v60
    %100 = vmatprep.subr.mxu0 0.0
    %101 = vmatpush1.msra.mxu0 0.0
    %102 = vmatprep.subr.mxu0 0.0
    %103 = vmatpush1.msra.mxu0 0.0
    %104 = vmatprep.subr.mxu0 0.0
    %105 = vmatpush1.msra.mxu0 0.0
    %106 = vmatprep.subr.mxu0 0.0
    %107 = vmatpush1.msra.mxu0 0.0
    %108 = vmatprep.subr.mxu0 0.0
    %109 = vmatpush1.msra.mxu0 0.0
    %110 = vmatprep.subr.mxu0 0.0
    %111 = vmatpush1.msra.mxu0 0.0
    %112 = vmatprep.subr.mxu0 0.0
    %113 = vmatpush1.msra.mxu0 0.0
    %114 = vmatprep.subr.mxu0 0.0
    %115 = vmatpush1.msra.mxu0 0.0
    %116 = vmatprep.subr.mxu0 0.0
    %117 = vmatpush1.msra.mxu0 0.0
    %118 = vmatprep.subr.mxu0 0.0
    %119 = vmatpush1.msra.mxu0 0.0
    %120 = vmatprep.subr.mxu0 0.0
    %121 = vmatpush1.msra.mxu0 0.0
    %122 = vmatprep.subr.mxu0 0.0
    %123 = vmatpush1.msra.mxu0 0.0
    %124 = vmatprep.subr.mxu0 0.0
    %125 = vmatpush1.msra.mxu0 0.0
    %126 = vmatprep.subr.mxu0 0.0
    %127 = vmatpush1.msra.mxu0 0.0
    %128 = vmatprep.subr.mxu0 0.0
    %129 = vmatpush1.msra.mxu0 0.0
    %130 = vmatprep.subr.mxu0 0.0
    %131 = vmatpush1.msra.mxu0 0.0
    %132 = vmatprep.subr.mxu0 0.0
    %133 = vmatpush1.msra.mxu0 0.0
    %134 = vmatprep.subr.mxu0 0.0
    %135 = vmatpush1.msra.mxu0 0.0
    %136 = vmatprep.subr.mxu0 0.0
    %137 = vmatpush1.msra.mxu0 0.0
    %138 = vmatprep.subr.mxu0 0.0
    %139 = vmatpush1.msra.mxu0 0.0
    %140 = vmatprep.subr.mxu0 0.0
    %141 = vmatpush1.msra.mxu0 0.0
    %142 = vmatprep.subr.mxu0 0.0
    %143 = vmatpush1.msra.mxu0 0.0
    %144 = vmatprep.subr.mxu0 0.0
    %145 = vmatpush1.msra.mxu0 0.0
    %146 = vmatprep.subr.mxu0 0.0
    %147 = vmatpush1.msra.mxu0 0.0
    %148 = vmatprep.mubr.f32.mxu0 0.0
    %149 = vmatmul.mubr.f32.gmra.mrb[0].mxu0 %v76
    %v150 = vpop.f32.mrb[0].mxu0
    %v151 = vadd.f32 %v67, %v150
    %v152 = vpop.f32.mrb[0].mxu0
    %v153 = vadd.f32 %v71, %v152
    %154 = vmatprep.mubr.f32.mxu0 0.0
    %155 = vmatmul.mubr.f32.gmra.mrb[0].mxu0 %v79
    %v156 = vpop.f32.mrb[0].mxu0
    %v157 = vadd.f32 %v67, %v156
    %v158 = vpop.f32.mrb[0].mxu0
    %v159 = vadd.f32 %v71, %v158
    %160 = vmatprep.mubr.f32.mxu0 0.0
    %161 = vmatmul.mubr.f32.gmra.mrb[0].mxu0 %v82
    %v162 = vpop.f32.mrb[0].mxu0
    %v163 = vadd.f32 %v67, %v162
    %v164 = vpop.f32.mrb[0].mxu0
    %v165 = vadd.f32 %v71, %v164
    %166 = vdwg.mxu0
    %167 = vst [vmem:[#allocation7] sm:$0xff] %v151
    %168 = vst [vmem:[#allocation7 + $0x8] sm:$0xff] %v153
    %169 = vst [vmem:[#allocation7 + $0x10] sm:$0xff] %v157
    %170 = vst [vmem:[#allocation7 + $0x18] sm:$0xff] %v159
    %171 = vst [vmem:[#allocation7 + $0x20] sm:$0xff] %v163
    %172 = vst [vmem:[#allocation7 + $0x28] sm:$0xff] %v165
    // Predicated region
    $region22: #{tpu_custom_call.1} parent=1 // pred_check
      _
    $region23: #{tpu_custom_call.1} parent=1 // pred_check_branch
      %174 = sbr.rel (0) target = $region25
    $region24: #{tpu_custom_call.1} parent=1 // pred_region
      %s176 = ssub.s32 768, 768
      %177 = vsyncadd [#allocation4], %s176
      %s178 = sshll.u32 [#allocation7], 4
      %s179 = int_to_ptr.vmem [resolvable:$true] %s178
      %184 = dma.vmem_to_hbm [thread:$0]  %s179, 768, %s3, [#allocation4], 256, 256, 16
    $region25: #{tpu_custom_call.1} parent=1 // pred_fallthru
      _
    // Predicated region
    $region26: #{tpu_custom_call.1} parent=1 // pred_check
      _
    $region27: #{tpu_custom_call.1} parent=1 // pred_check_branch
      %186 = sbr.rel (0) target = $region29
    $region28: #{tpu_custom_call.1} parent=1 // pred_region
      %187 = dma.done [#allocation4], 768
    $region29: #{tpu_custom_call.1} parent=1 // pred_fallthru
      _
    %188 = vsyncpa [#allocation3], 1
    %189 = vsyncpa [#allocation6], 1
    %190 = vsyncpa [#allocation4], 1

</llo_original>
